<compile_context>
chip_gen: v7x
topology: tpu7x:2x2x1
jax: 0.10.0
libtpu: 0.0.40
codegen_flags: <defaults>
</compile_context>

<pallas_src>
import jax
import jax.numpy as jnp
from jax import lax
from jax.experimental import pallas as pl
from jax.experimental.pallas import tpu as pltpu


def _embedder_kernel(h0_ref, h1_ref, p_ref, out_ref):
    # h0_ref : (Bt, N0, 1)   h1_ref : (Bt, N1, 2)
    # p_ref  : (5, E)   rows = [w0, b0, w1_birth, w1_death, b1]
    # out_ref: (Bt, N0+N1, E)
    bt = out_ref.shape[0]
    e = p_ref.shape[1]
    n0 = h0_ref.shape[1]
    n1 = h1_ref.shape[1]

    p = p_ref[...]
    w0, b0, w1a, w1b, b1 = p[0:1], p[1:2], p[2:3], p[3:4], p[4:5]   # each (1, E)

    # Batch-chunk size: keep each chunk's dense intermediates within ~16 vregs
    # per value so the loop body never spills meaningfully (pure VPU work,
    # fully hidden under the HBM-write bound).
    row_vregs = ((-(-n0 // 8)) + (-(-n1 // 8))) * (-(-e // 128))
    cb = max(1, min(bt, 16 // max(row_vregs, 1)))

    def emit(start, size):
        h0 = h0_ref[pl.ds(start, size), :, :]              # (size, N0, 1)
        h1 = h1_ref[pl.ds(start, size), :, :]              # (size, N1, 2)
        # Linear(1, E): one VPU broadcast-FMA.
        h0e = (h0 * w0 + b0).astype(out_ref.dtype)          # (size, N0, E)
        # Linear(2, E): two VPU broadcast-FMAs (keep K=2 off the MXU).
        h1e = (h1[:, :, 0:1] * w1a + h1[:, :, 1:2] * w1b + b1).astype(out_ref.dtype)
        if n0 % 8 == 0:
            # Split point is sublane-aligned: two dense stores.
            out_ref[pl.ds(start, size), :n0, :] = h0e
            out_ref[pl.ds(start, size), n0:, :] = h1e
        else:
            # Unaligned split: concatenate in registers, single dense store.
            out_ref[pl.ds(start, size), :, :] = jnp.concatenate([h0e, h1e], axis=1)

    n_full = bt // cb
    if n_full > 0:
        def body(c, carry):
            emit(pl.multiple_of(c * cb, cb), cb)
            return carry
        lax.fori_loop(0, n_full, body, 0)
    rem = bt - n_full * cb
    if rem > 0:
        emit(n_full * cb, rem)


def _chip_info():
    """Best-effort per-generation tuning knobs (TC count, VMEM limits)."""
    kind = ""
    try:
        kind = jax.devices()[0].device_kind.lower()
    except Exception:
        pass
    if "v7" in kind:
        # 2 TensorCores, only 64 MiB physical VMEM per core: cap the limit.
        return {"num_tc": 2, "vmem_limit": 48 << 20, "block_budget": 20 << 20}
    if "lite" in kind or "v5e" in kind or "v6e" in kind:
        # v5e / v6e: single TensorCore, 128 MiB physical VMEM -> go big,
        # never force extra grid steps.
        return {"num_tc": 1, "vmem_limit": 96 << 20, "block_budget": 48 << 20}
    if "v4" in kind or "v5p" in kind or "v5" in kind:
        return {"num_tc": 2, "vmem_limit": 64 << 20, "block_budget": 24 << 20}
    # Unknown backend (e.g. interpret): conservative defaults.
    return {"num_tc": 1, "vmem_limit": 48 << 20, "block_budget": 16 << 20}


def _choose_block_b(B, N0, N1, E, *, target_rows, budget_bytes, num_tc):
    """How many batch elements each grid step processes."""
    N = N0 + N1
    sub8 = lambda x: -(-x // 8) * 8
    lane128 = lambda x: -(-x // 128) * 128
    # VMEM bytes per batch element for one buffer set (f32). The H0/H1 input
    # blocks have last dim 1/2 and therefore lane-pad to 128 inside VMEM.
    per_b = 4 * (sub8(N0) * 128 + sub8(N1) * 128 + sub8(N) * lane128(E))
    bt_vmem = max(1, budget_bytes // (2 * per_b))          # x2: double-buffered
    bt_rows = max(1, target_rows // max(N, 1))             # ~2-4 MiB emb blocks
    bt = max(1, min(B, bt_rows, bt_vmem))
    if num_tc > 1 and B >= num_tc:
        # Multi-TC chips only: keep the grid a multiple of the core count so
        # the 'parallel' batch axis splits evenly across TensorCores.
        steps = pl.cdiv(B, bt)
        steps = -(-steps // num_tc) * num_tc
        bt = max(1, pl.cdiv(B, steps))
    return bt


def diagram_embedder(H0, H1, H0_mask, H1_mask, W0, b0, W1, b1, *, block_b=None):
    """Pallas implementation of DiagramEmbedder.forward.

    H0: (B, N0), H1: (B, N1, 2), masks: (B, N0)/(B, N1).
    W0: (E, 1), b0: (E,), W1: (E, 2), b1: (E,)  -- torch.nn.Linear layout.
    Returns (emb (B, N0+N1, E), mask (B, N0+N1)).
    """
    B, N0 = H0.shape
    _, N1, _ = H1.shape
    E = W0.shape[0]
    N = N0 + N1
    out_dtype = jnp.result_type(H0.dtype, W0.dtype)

    info = _chip_info()
    if block_b is None:
        block_b = _choose_block_b(B, N0, N1, E, target_rows=8192,
                                  budget_bytes=info["block_budget"],
                                  num_tc=info["num_tc"])
    grid_b = pl.cdiv(B, block_b)        # no batch padding: edge block is clipped

    # Free, contiguous host-side views / tiny param packing.
    H0r = H0.reshape(B, N0, 1).astype(out_dtype)     # the .view(B, N0, 1)
    H1c = H1.astype(out_dtype)
    params = jnp.stack([W0[:, 0], b0, W1[:, 0], W1[:, 1], b1], axis=0).astype(out_dtype)

    emb = pl.pallas_call(
        _embedder_kernel,
        out_shape=jax.ShapeDtypeStruct((B, N, E), out_dtype),
        grid=(grid_b,),
        in_specs=[
            pl.BlockSpec((block_b, N0, 1), lambda i: (i, 0, 0)),
            pl.BlockSpec((block_b, N1, 2), lambda i: (i, 0, 0)),
            pl.BlockSpec((5, E), lambda i: (0, 0)),
        ],
        out_specs=pl.BlockSpec((block_b, N, E), lambda i: (i, 0, 0)),
        compiler_params=pltpu.CompilerParams(
            dimension_semantics=("parallel",),
            vmem_limit_bytes=info["vmem_limit"],
        ),
    )(H0r, H1c, params)

    # torch.cat([H0_mask, H1_mask], dim=1): tiny (B, N) array -- done in plain
    # XLA so the kernel never emits a lane-padded (B, N, 1) output block.
    mask = jnp.concatenate([H0_mask, H1_mask], axis=1)
    return emb, mask


def _reference(H0, H1, H0_mask, H1_mask, W0, b0, W1, b1):
    H0r = H0[..., None]                                   # (B, N0, 1)
    H0_emb = jnp.einsum("bni,ei->bne", H0r, W0) + b0      # Linear(1, E)
    H1_emb = jnp.einsum("bni,ei->bne", H1, W1) + b1       # Linear(2, E)
    return (jnp.concatenate([H0_emb, H1_emb], axis=1),
            jnp.concatenate([H0_mask, H1_mask], axis=1))


if __name__ == "__main__":
    # Small demo shapes; E lane-aligned (multiple of 128), N0 a multiple of 8
    # so the fused output split point lands on a sublane-tile boundary.
    B, N0, N1, E = 4, 8, 8, 128

    key = jax.random.PRNGKey(0)
    k_h0, k_h1, k_w0, k_b0, k_w1, k_b1, k_m0, k_m1 = jax.random.split(key, 8)

    # Deterministic synthetic parameters (torch.nn.Linear shapes).
    W0 = jax.random.normal(k_w0, (E, 1), dtype=jnp.float32) * 0.5
    b0 = jax.random.normal(k_b0, (E,), dtype=jnp.float32) * 0.1
    W1 = jax.random.normal(k_w1, (E, 2), dtype=jnp.float32) * 0.5
    b1 = jax.random.normal(k_b1, (E,), dtype=jnp.float32) * 0.1

    # Inputs: persistence-diagram points and validity masks.
    H0 = jax.random.normal(k_h0, (B, N0), dtype=jnp.float32)
    H1 = jax.random.normal(k_h1, (B, N1, 2), dtype=jnp.float32)
    H0_mask = (jax.random.uniform(k_m0, (B, N0)) > 0.3).astype(jnp.float32)
    H1_mask = (jax.random.uniform(k_m1, (B, N1)) > 0.3).astype(jnp.float32)

    emb, mask = diagram_embedder(H0, H1, H0_mask, H1_mask, W0, b0, W1, b1)
    emb = jax.block_until_ready(emb)
    mask = jax.block_until_ready(mask)

    ref_emb, ref_mask = _reference(H0, H1, H0_mask, H1_mask, W0, b0, W1, b1)
    assert emb.shape == (B, N0 + N1, E) and mask.shape == (B, N0 + N1)
    assert jnp.allclose(emb, ref_emb, atol=1e-5, rtol=1e-5)
    assert jnp.allclose(mask, ref_mask)

    print("KERNEL_OK")
</pallas_src>

<mosaic_0001>
module attributes {stable_mosaic.version = 11 : i64} {
  func.func @_embedder_kernel(%arg0: i32, %arg1: memref<4x8x1xf32, #tpu.memory_space<vmem>>, %arg2: memref<4x8x2xf32, #tpu.memory_space<vmem>>, %arg3: memref<5x128xf32, #tpu.memory_space<vmem>>, %arg4: memref<4x16x128xf32, #tpu.memory_space<vmem>>) attributes {dimension_semantics = [#tpu.dimension_semantics<parallel>], iteration_bounds = array<i64: 1>, scalar_prefetch = 0 : i64, scratch_operands = 0 : i64, tpu.core_type = #tpu.core_type<tc>, window_params = [{transform_indices = @transform_0, window_bounds = array<i64: 4, 8, 1>}, {transform_indices = @transform_1, window_bounds = array<i64: 4, 8, 2>}, {pipeline_mode = #tpu.pipeline_mode<synchronous>, transform_indices = @transform_2, window_bounds = array<i64: 5, 128>}, {transform_indices = @transform_3, window_bounds = array<i64: 4, 16, 128>}]} {
    %c0 = arith.constant 0 : index
    %c0_0 = arith.constant 0 : index
    %0 = vector.load %arg3[%c0, %c0_0] : memref<5x128xf32, #tpu.memory_space<vmem>>, vector<5x128xf32>
    %1 = vector.extract_strided_slice %0 {offsets = [0, 0], sizes = [1, 128], strides = [1, 1]} : vector<5x128xf32> to vector<1x128xf32>
    %2 = vector.extract_strided_slice %0 {offsets = [1, 0], sizes = [1, 128], strides = [1, 1]} : vector<5x128xf32> to vector<1x128xf32>
    %3 = vector.extract_strided_slice %0 {offsets = [2, 0], sizes = [1, 128], strides = [1, 1]} : vector<5x128xf32> to vector<1x128xf32>
    %4 = vector.extract_strided_slice %0 {offsets = [3, 0], sizes = [1, 128], strides = [1, 1]} : vector<5x128xf32> to vector<1x128xf32>
    %5 = vector.extract_strided_slice %0 {offsets = [4, 0], sizes = [1, 128], strides = [1, 1]} : vector<5x128xf32> to vector<1x128xf32>
    %c0_i32 = arith.constant 0 : i32
    %c4_i32 = arith.constant 4 : i32
    %6 = arith.muli %c0_i32, %c4_i32 : i32
    %7 = tpu.assume_multiple %6, 4 : i32
    %8 = arith.index_cast %7 : i32 to index
    %c0_1 = arith.constant 0 : index
    %c0_2 = arith.constant 0 : index
    %9 = vector.load %arg1[%8, %c0_1, %c0_2] : memref<4x8x1xf32, #tpu.memory_space<vmem>>, vector<4x8x1xf32>
    %10 = arith.index_cast %7 : i32 to index
    %c0_3 = arith.constant 0 : index
    %c0_4 = arith.constant 0 : index
    %11 = vector.load %arg2[%10, %c0_3, %c0_4] : memref<4x8x2xf32, #tpu.memory_space<vmem>>, vector<4x8x2xf32>
    %12 = vector.shape_cast %1 : vector<1x128xf32> to vector<1x1x128xf32>
    %13 = vector.broadcast %9 : vector<4x8x1xf32> to vector<4x8x128xf32>
    %14 = vector.broadcast %12 : vector<1x1x128xf32> to vector<4x8x128xf32>
    %15 = arith.mulf %13, %14 : vector<4x8x128xf32>
    %16 = vector.shape_cast %2 : vector<1x128xf32> to vector<1x1x128xf32>
    %17 = vector.broadcast %16 : vector<1x1x128xf32> to vector<4x8x128xf32>
    %18 = arith.addf %15, %17 : vector<4x8x128xf32>
    %19 = vector.extract_strided_slice %11 {offsets = [0, 0, 0], sizes = [4, 8, 1], strides = [1, 1, 1]} : vector<4x8x2xf32> to vector<4x8x1xf32>
    %20 = vector.shape_cast %3 : vector<1x128xf32> to vector<1x1x128xf32>
    %21 = vector.broadcast %19 : vector<4x8x1xf32> to vector<4x8x128xf32>
    %22 = vector.broadcast %20 : vector<1x1x128xf32> to vector<4x8x128xf32>
    %23 = arith.mulf %21, %22 : vector<4x8x128xf32>
    %24 = vector.extract_strided_slice %11 {offsets = [0, 0, 1], sizes = [4, 8, 1], strides = [1, 1, 1]} : vector<4x8x2xf32> to vector<4x8x1xf32>
    %25 = vector.shape_cast %4 : vector<1x128xf32> to vector<1x1x128xf32>
    %26 = vector.broadcast %24 : vector<4x8x1xf32> to vector<4x8x128xf32>
    %27 = vector.broadcast %25 : vector<1x1x128xf32> to vector<4x8x128xf32>
    %28 = arith.mulf %26, %27 : vector<4x8x128xf32>
    %29 = arith.addf %23, %28 : vector<4x8x128xf32>
    %30 = vector.shape_cast %5 : vector<1x128xf32> to vector<1x1x128xf32>
    %31 = vector.broadcast %30 : vector<1x1x128xf32> to vector<4x8x128xf32>
    %32 = arith.addf %29, %31 : vector<4x8x128xf32>
    %33 = arith.index_cast %7 : i32 to index
    %c0_5 = arith.constant 0 : index
    %c0_6 = arith.constant 0 : index
    %34 = vector.load %arg4[%33, %c0_5, %c0_6] : memref<4x16x128xf32, #tpu.memory_space<vmem>>, vector<4x8x128xf32>
    tpu.vector_store %arg4[%33, %c0_5, %c0_6], %18 {strides = array<i32>} : memref<4x16x128xf32, #tpu.memory_space<vmem>>, vector<4x8x128xf32>,
    %35 = arith.index_cast %7 : i32 to index
    %c8 = arith.constant 8 : index
    %c0_7 = arith.constant 0 : index
    %36 = vector.load %arg4[%35, %c8, %c0_7] : memref<4x16x128xf32, #tpu.memory_space<vmem>>, vector<4x8x128xf32>
    tpu.vector_store %arg4[%35, %c8, %c0_7], %32 {strides = array<i32>} : memref<4x16x128xf32, #tpu.memory_space<vmem>>, vector<4x8x128xf32>,
    %c1_i32 = arith.constant 1 : i32
    return
  }
  func.func @transform_0(%arg0: i32) -> (i32, i32, i32) {
    %c0_i32 = arith.constant 0 : i32
    %c0_i32_0 = arith.constant 0 : i32
    %c0_i32_1 = arith.constant 0 : i32
    return %arg0, %c0_i32, %c0_i32_0 : i32, i32, i32
  }
  func.func @transform_1(%arg0: i32) -> (i32, i32, i32) {
    %c0_i32 = arith.constant 0 : i32
    %c0_i32_0 = arith.constant 0 : i32
    %c0_i32_1 = arith.constant 0 : i32
    return %arg0, %c0_i32, %c0_i32_0 : i32, i32, i32
  }
  func.func @transform_2(%arg0: i32) -> (i32, i32) {
    %c0_i32 = arith.constant 0 : i32
    %c0_i32_0 = arith.constant 0 : i32
    %c0_i32_1 = arith.constant 0 : i32
    return %c0_i32, %c0_i32_0 : i32, i32
  }
  func.func @transform_3(%arg0: i32) -> (i32, i32, i32) {
    %c0_i32 = arith.constant 0 : i32
    %c0_i32_0 = arith.constant 0 : i32
    %c0_i32_1 = arith.constant 0 : i32
    return %arg0, %c0_i32, %c0_i32_0 : i32, i32, i32
  }
}

</mosaic_0001>

<llo_original>
// kernel: tpu_custom_call.1
$region0: #{tpu_custom_call.1}
  #allocation0 [shape = 'u32[]', space=smem, size = 0x4, offset = 0x4, fixed_abs, tag = 'smem constant byte address 0x4 - core index']
  #allocation1 [shape = 'u32[144,128]{1,0:T(1,128)}', space=vmem, size = 0x12000, scoped, tag = 'internal scratch']
  %s0 = inlined_call_operand.vmem [shape: f32[4,8,1], index: 0, kind: input, shape index: {}]
  %s1 = inlined_call_operand.vmem [shape: f32[4,8,2], index: 1, kind: input, shape index: {}]
  %s2 = inlined_call_operand.vmem [shape: f32[5,128], index: 2, kind: input, shape index: {}]
  %s3 = inlined_call_operand.hbm [shape: f32[4,16,128], index: 3, kind: output, shape index: {}]
  %s4 = sld [smem:[#allocation0]]
  $region22: #{tpu_custom_call.1} parent=0
    _
  %s6 = ssub.s32 1, %s4
  %s7 = scalar_select 0, %s6, %s4
  $region1: #{tpu_custom_call.1} parent=0
    #allocation2 [shape = 'u8[32768]{0}', space=vmem, size = 0x8000, scoped, tag = 'output window, operand 0, single buffered']
    #allocation3 [shape = 's32[1]{0}', space=sflag, size = 0x4, scoped, tag = 'scoped memory for tpu_custom_call.1']
    %8 = vsyncpa [#allocation3], 0
    // Predicated region
    $region2: #{tpu_custom_call.1} parent=1 // pred_check
      _
    $region3: #{tpu_custom_call.1} parent=1 // pred_check_branch
      %10 = sbr.rel (0) target = $region5
    $region4: #{tpu_custom_call.1} parent=1 // pred_region
      _
    $region5: #{tpu_custom_call.1} parent=1 // pred_fallthru
      _
    // Predicated region
    $region6: #{tpu_custom_call.1} parent=1 // pred_check
      _
    $region7: #{tpu_custom_call.1} parent=1 // pred_check_branch
      %12 = sbr.rel (0) target = $region9
    $region8: #{tpu_custom_call.1} parent=1 // pred_region
      _
    $region9: #{tpu_custom_call.1} parent=1 // pred_fallthru
      _
    // Predicated region
    $region10: #{tpu_custom_call.1} parent=1 // pred_check
      _
    $region11: #{tpu_custom_call.1} parent=1 // pred_check_branch
      %14 = sbr.rel (0) target = $region13
    $region12: #{tpu_custom_call.1} parent=1 // pred_region
      _
    $region13: #{tpu_custom_call.1} parent=1 // pred_fallthru
      _
    %v15 = vld [vmem:[%s2] sm:$0x1f]
    %s16 = smul.u32 0, 8
    %s17 = scalar_lea.vmem %s0, %s16
    %v18 = vld [vmem:[%s17] sm:$0xff]
    %v19 = vld [vmem:[%s17 + $0x8] sm:$0xff]
    %v20 = vld [vmem:[%s17 + $0x10] sm:$0xff]
    %v21 = vld [vmem:[%s17 + $0x18] sm:$0xff]
    %s22 = scalar_lea.vmem %s1, %s16
    %v23 = vld [vmem:[%s22] sm:$0xff]
    %v24 = vld [vmem:[%s22 + $0x8] sm:$0xff]
    %v25 = vld [vmem:[%s22 + $0x10] sm:$0xff]
    %v26 = vld [vmem:[%s22 + $0x18] sm:$0xff]
    %28 = vset.pattern.permute.xlu0 0
    %29 = vperm.xlu0 %28, %v18
    %v30 = vpop.permute.xlu0 %29
    %33 = vset.pattern.permute.xlu0 0
    %34 = vperm.xlu0 %33, %v19
    %v35 = vpop.permute.xlu0 %34
    %38 = vset.pattern.permute.xlu0 0
    %39 = vperm.xlu0 %38, %v20
    %v40 = vpop.permute.xlu0 %39
    %43 = vset.pattern.permute.xlu0 0
    %44 = vperm.xlu0 %43, %v21
    %v45 = vpop.permute.xlu0 %44
    %v47 = vlaneseq
    %v48 = vshrl.u32 %v47, 7
    %v49 = vsub.s32 0, %v48
    %v50 = vrot.slane %v15, %v49
    %v51 = vmul.f32 %v30, %v50
    %v52 = vmul.f32 %v35, %v50
    %v53 = vmul.f32 %v40, %v50
    %v54 = vmul.f32 %v45, %v50
    %v55 = vlaneseq
    %v56 = vshrl.u32 %v55, 7
    %v57 = vsub.s32 1, %v56
    %v58 = vrot.slane %v15, %v57
    %v59 = vadd.f32 %v51, %v58
    %v60 = vadd.f32 %v52, %v58
    %v61 = vadd.f32 %v53, %v58
    %v62 = vadd.f32 %v54, %v58
    %64 = vset.pattern.permute.xlu0 0
    %65 = vperm.xlu0 %64, %v23
    %v66 = vpop.permute.xlu0 %65
    %69 = vset.pattern.permute.xlu0 0
    %70 = vperm.xlu0 %69, %v24
    %v71 = vpop.permute.xlu0 %70
    %74 = vset.pattern.permute.xlu0 0
    %75 = vperm.xlu0 %74, %v25
    %v76 = vpop.permute.xlu0 %75
    %79 = vset.pattern.permute.xlu0 0
    %80 = vperm.xlu0 %79, %v26
    %v81 = vpop.permute.xlu0 %80
    %v83 = vlaneseq
    %v84 = vshrl.u32 %v83, 7
    %v85 = vsub.s32 2, %v84
    %v86 = vrot.slane %v15, %v85
    %v87 = vmul.f32 %v66, %v86
    %v88 = vmul.f32 %v71, %v86
    %v89 = vmul.f32 %v76, %v86
    %v90 = vmul.f32 %v81, %v86
    %91 = vset.pattern.permute.xlu0 1
    %92 = vperm.xlu0 %91, %v23
    %v93 = vpop.permute.xlu0 %92
    %95 = vset.pattern.permute.xlu0 1
    %96 = vperm.xlu0 %95, %v24
    %v97 = vpop.permute.xlu0 %96
    %99 = vset.pattern.permute.xlu0 1
    %100 = vperm.xlu0 %99, %v25
    %v101 = vpop.permute.xlu0 %100
    %103 = vset.pattern.permute.xlu0 1
    %104 = vperm.xlu0 %103, %v26
    %v105 = vpop.permute.xlu0 %104
    %v107 = vlaneseq
    %v108 = vshrl.u32 %v107, 7
    %v109 = vsub.s32 3, %v108
    %v110 = vrot.slane %v15, %v109
    %v111 = vmul.f32 %v93, %v110
    %v112 = vmul.f32 %v97, %v110
    %v113 = vmul.f32 %v101, %v110
    %v114 = vmul.f32 %v105, %v110
    %v115 = vadd.f32 %v87, %v111
    %v116 = vadd.f32 %v88, %v112
    %v117 = vadd.f32 %v89, %v113
    %v118 = vadd.f32 %v90, %v114
    %v119 = vlaneseq
    %v120 = vshrl.u32 %v119, 7
    %v121 = vsub.s32 4, %v120
    %v122 = vrot.slane %v15, %v121
    %v123 = vadd.f32 %v115, %v122
    %v124 = vadd.f32 %v116, %v122
    %v125 = vadd.f32 %v117, %v122
    %v126 = vadd.f32 %v118, %v122
    %s127 = smul.u32 0, 16
    %s128 = scalar_lea.vmem [#allocation2], %s127
    %129 = vst [vmem:[%s128] sm:$0xff] %v59
    %130 = vst [vmem:[%s128 + $0x10] sm:$0xff] %v60
    %131 = vst [vmem:[%s128 + $0x20] sm:$0xff] %v61
    %132 = vst [vmem:[%s128 + $0x30] sm:$0xff] %v62
    %133 = vst [vmem:[%s128 + $0x8] sm:$0xff] %v123
    %134 = vst [vmem:[%s128 + $0x18] sm:$0xff] %v124
    %135 = vst [vmem:[%s128 + $0x28] sm:$0xff] %v125
    %136 = vst [vmem:[%s128 + $0x38] sm:$0xff] %v126
    // Predicated region
    $region14: #{tpu_custom_call.1} parent=1 // pred_check
      _
    $region15: #{tpu_custom_call.1} parent=1 // pred_check_branch
      %138 = sbr.rel (0) target = $region17
    $region16: #{tpu_custom_call.1} parent=1 // pred_region
      %s140 = ssub.s32 1024, 1024
      %141 = vsyncadd [#allocation3], %s140
      %s142 = sshll.u32 [#allocation2], 4
      %s143 = int_to_ptr.vmem [resolvable:$true] %s142
      %148 = dma.vmem_to_hbm [thread:$0]  %s143, 1024, %s3, [#allocation3], 128, 128, 8
    $region17: #{tpu_custom_call.1} parent=1 // pred_fallthru
      _
    // Predicated region
    $region18: #{tpu_custom_call.1} parent=1 // pred_check
      _
    $region19: #{tpu_custom_call.1} parent=1 // pred_check_branch
      %150 = sbr.rel (0) target = $region21
    $region20: #{tpu_custom_call.1} parent=1 // pred_region
      %151 = dma.done [#allocation3], 1024
    $region21: #{tpu_custom_call.1} parent=1 // pred_fallthru
      _
    %152 = vsyncpa [#allocation3], 1

</llo_original>
